<compile_context>
chip_gen: v6e
topology: v6e:2x2x1
jax: 0.10.0
libtpu: 0.0.40
codegen_flags: <defaults>
</compile_context>

<pallas_src>
import functools

import jax
import jax.numpy as jnp
from jax.experimental import pallas as pl
from jax.experimental.pallas import tpu as pltpu


def _round_up(x: int, n: int) -> int:
    return ((x + n - 1) // n) * n


def _linear_kernel(z_ref, w_ref, b_ref, o_ref):
    # z_ref: (tmr, K)  w_ref: (K, N)  b_ref: (1, N)  o_ref: (tmr, N)
    acc = jnp.dot(z_ref[...], w_ref[...], preferred_element_type=jnp.float32)
    o_ref[...] = (acc + b_ref[...]).astype(o_ref.dtype)


@functools.partial(jax.jit, static_argnames=("tm",))
def tm_score_head_forward(z, weight, bias, *, tm=2048):
    """Pallas implementation of TMScoreHead.forward (logits = z @ W + b).

    Args:
      z:      [*, seq, seq, c_z] pairwise embedding (float32)
      weight: [c_z, num_bins]   (note: transposed vs. torch's nn.Linear storage)
      bias:   [num_bins]
      tm:     row-tile budget in (unfolded) rows; mem-bound so bigger is better.

    Returns:
      [*, seq, seq, num_bins] logits
    """
    c_z = z.shape[-1]
    num_bins = weight.shape[-1]
    lead_shape = z.shape[:-1]
    m = 1
    for d in lead_shape:
        m *= d

    # Fold `pair` consecutive rows into one so the output last dim is
    # pair*num_bins (>=128 lanes) -> unmasked full-width stores.
    pair = 2 if (num_bins < 128 and m % 2 == 0) else 1

    mr = m // pair            # folded row count
    kdim = pair * c_z         # folded contraction dim
    ndim = pair * num_bins    # folded output lanes

    z2d = z.reshape(mr, kdim)  # free row-major view
    if pair == 1:
        w_big = weight
        b_big = bias.reshape(1, ndim)
    else:
        # blockdiag(W, ..., W): kron(I_pair, W); tiny, built once per call.
        w_big = jnp.kron(jnp.eye(pair, dtype=weight.dtype), weight)
        b_big = jnp.tile(bias, pair).reshape(1, ndim)

    # Row tile: as large as possible, clamped to the problem, sublane-aligned,
    # and split into >=2 grid steps when there's enough work (v7x's 2 TCs).
    tmr = max(8, tm // pair)
    tmr = min(tmr, _round_up(mr, 8))
    if pl.cdiv(mr, tmr) == 1 and mr > 16:
        tmr = _round_up(pl.cdiv(mr, 2), 8)
    grid = (pl.cdiv(mr, tmr),)

    cost = pl.CostEstimate(
        flops=2 * m * c_z * num_bins,
        transcendentals=0,
        bytes_accessed=(z.dtype.itemsize * m * c_z
                        + z.dtype.itemsize * m * num_bins
                        + weight.dtype.itemsize * c_z * num_bins),
    )

    out = pl.pallas_call(
        _linear_kernel,
        out_shape=jax.ShapeDtypeStruct((mr, ndim), z.dtype),
        grid_spec=pltpu.PrefetchScalarGridSpec(
            num_scalar_prefetch=0,
            grid=grid,
            in_specs=[
                pl.BlockSpec((tmr, kdim), lambda i: (i, 0)),
                pl.BlockSpec((kdim, ndim), lambda i: (0, 0)),  # resident weight
                pl.BlockSpec((1, ndim), lambda i: (0, 0)),     # resident bias
            ],
            out_specs=pl.BlockSpec((tmr, ndim), lambda i: (i, 0)),
        ),
        compiler_params=pltpu.CompilerParams(
            dimension_semantics=("parallel",),
        ),
        cost_estimate=cost,
    )(z2d, w_big, b_big)

    # Free view back to [*, seq, seq, num_bins].
    return out.reshape(*lead_shape, num_bins)


if __name__ == "__main__":
    # Small, deterministic example consistent with the module's forward:
    # z: [batch, seq, seq, c_z]
    batch, seq, c_z, num_bins = 2, 8, 32, 64

    key = jax.random.PRNGKey(0)
    kz, kw, kb = jax.random.split(key, 3)

    z = jax.random.normal(kz, (batch, seq, seq, c_z), dtype=jnp.float32)
    # NOTE: the module uses init='final' (zero-init weights). We use small
    # deterministic random values instead so the kernel computation is nontrivial.
    weight = 0.02 * jax.random.normal(kw, (c_z, num_bins), dtype=jnp.float32)
    bias = 0.01 * jax.random.normal(kb, (num_bins,), dtype=jnp.float32)

    logits = tm_score_head_forward(z, weight, bias)
    logits = jax.block_until_ready(logits)

    # Sanity check against plain-JAX reference.
    ref = jnp.einsum("bijc,cn->bijn", z, weight) + bias
    assert logits.shape == (batch, seq, seq, num_bins)
    assert jnp.allclose(logits, ref, atol=1e-5, rtol=1e-5)

    print("KERNEL_OK")
</pallas_src>

<mosaic_0001>
module attributes {stable_mosaic.version = 11 : i64} {
  func.func @_linear_kernel(%arg0: i32, %arg1: memref<32x64xf32, #tpu.memory_space<vmem>>, %arg2: memref<64x128xf32, #tpu.memory_space<vmem>>, %arg3: memref<1x128xf32, #tpu.memory_space<vmem>>, %arg4: memref<32x128xf32, #tpu.memory_space<vmem>>) attributes {dimension_semantics = [#tpu.dimension_semantics<parallel>], iteration_bounds = array<i64: 2>, scalar_prefetch = 0 : i64, scratch_operands = 0 : i64, tpu.core_type = #tpu.core_type<tc>, window_params = [{transform_indices = @transform_0, window_bounds = array<i64: 32, 64>}, {pipeline_mode = #tpu.pipeline_mode<synchronous>, transform_indices = @transform_1, window_bounds = array<i64: 64, 128>}, {pipeline_mode = #tpu.pipeline_mode<synchronous>, transform_indices = @transform_2, window_bounds = array<i64: 1, 128>}, {transform_indices = @transform_3, window_bounds = array<i64: 32, 128>}]} {
    %c0 = arith.constant 0 : index
    %c0_0 = arith.constant 0 : index
    %0 = vector.load %arg1[%c0, %c0_0] : memref<32x64xf32, #tpu.memory_space<vmem>>, vector<32x64xf32>
    %c0_1 = arith.constant 0 : index
    %c0_2 = arith.constant 0 : index
    %1 = vector.load %arg2[%c0_1, %c0_2] : memref<64x128xf32, #tpu.memory_space<vmem>>, vector<64x128xf32>
    %cst = arith.constant dense<0.000000e+00> : vector<32x128xf32>
    %2 = tpu.matmul %0, %1, %cst {dimension_numbers = #tpu.dot_dimension_numbers<[1], [0], [0], [1], [0, 0, 1, 1], [], []>} : vector<32x64xf32>, vector<64x128xf32>, vector<32x128xf32> -> vector<32x128xf32>
    %c0_3 = arith.constant 0 : index
    %c0_4 = arith.constant 0 : index
    %3 = vector.load %arg3[%c0_3, %c0_4] : memref<1x128xf32, #tpu.memory_space<vmem>>, vector<1x128xf32>
    %4 = vector.broadcast %3 : vector<1x128xf32> to vector<32x128xf32>
    %5 = arith.addf %2, %4 : vector<32x128xf32>
    %c0_5 = arith.constant 0 : index
    %c0_6 = arith.constant 0 : index
    %6 = vector.load %arg4[%c0_5, %c0_6] : memref<32x128xf32, #tpu.memory_space<vmem>>, vector<32x128xf32>
    tpu.vector_store %arg4[%c0_5, %c0_6], %5 {strides = array<i32>} : memref<32x128xf32, #tpu.memory_space<vmem>>, vector<32x128xf32>,
    return
  }
  func.func @transform_0(%arg0: i32) -> (i32, i32) {
    %c0_i32 = arith.constant 0 : i32
    %c0_i32_0 = arith.constant 0 : i32
    return %arg0, %c0_i32 : i32, i32
  }
  func.func @transform_1(%arg0: i32) -> (i32, i32) {
    %c0_i32 = arith.constant 0 : i32
    %c0_i32_0 = arith.constant 0 : i32
    %c0_i32_1 = arith.constant 0 : i32
    return %c0_i32, %c0_i32_0 : i32, i32
  }
  func.func @transform_2(%arg0: i32) -> (i32, i32) {
    %c0_i32 = arith.constant 0 : i32
    %c0_i32_0 = arith.constant 0 : i32
    %c0_i32_1 = arith.constant 0 : i32
    return %c0_i32, %c0_i32_0 : i32, i32
  }
  func.func @transform_3(%arg0: i32) -> (i32, i32) {
    %c0_i32 = arith.constant 0 : i32
    %c0_i32_0 = arith.constant 0 : i32
    return %arg0, %c0_i32 : i32, i32
  }
}

</mosaic_0001>

<llo_original>
// kernel: tile.8
$region0: #{tile.8}
  #allocation0 [shape = 's32[1]{0}', space=sflag, size = 0x4, scoped, tag = 'scoped memory for tile.8']
  %s0 = inlined_call_operand.vmem [shape: f32[64], index: 0, kind: input, shape index: {}]
  %s1 = inlined_call_operand.vmem [shape: f32[2,64], index: 1, kind: output, shape index: {}]
  // Predicated region
  $region2: #{tile.8} parent=0 // pred_check
    _
  $region3: #{tile.8} parent=0 // pred_check_branch
    %3 = sbr.rel (0) target = $region5
  $region4: #{tile.8} parent=0 // pred_region
    _
  $region5: #{tile.8} parent=0 // pred_fallthru
    _
  %v4 = vld [vmem:[%s0] ss:$0 sm:$0xff]
  %5 = vst [vmem:[%s1] sm:$0x3] %v4

// kernel: tile.9
$region0: #{tile.9}
  %s0 = inlined_call_operand.vmem [shape: f32[2,64], index: 0, kind: input, shape index: {}]
  %s1 = inlined_call_operand.vmem [shape: f32[1,128], index: 1, kind: output, shape index: {}]
  $region1: #{tile.9} parent=0
    #allocation0 [shape = 'u8[4096]{0}', space=vmem, size = 0x1000, scoped, tag = 'scoped mem for output reshape']
    #allocation1 [shape = 'u8[4096]{0}', space=vmem, size = 0x1000, scoped, tag = 'scoped mem for input reshape']
    %s3 = sshll.u32 1, 2
    %s4 = ssub.s32 %s3, 1
    %v5 = vld [vmem:[%s0] sm:%s4]
    %6 = vst [vmem:[#allocation1] sm:%s4] %v5
    %v7 = vld [vmem:[#allocation1] sm:$0x1]
    %vm8 = vcmask 523264
    %9 = vst.msk [vmem:[#allocation0] sm:$0x1] %vm8, %v7
    %s10 = scalar_lea.vmem [#allocation1], 1
    %v11 = vld [vmem:[%s10] sm:$0x1]
    %12 = vrot.lane.b32.xlu0 %v11, 64
    %v13 = vpop.permute.xlu0 %12
    %vm14 = vcmask 1048064
    %15 = vst.msk [vmem:[#allocation0] sm:$0x1] %vm14, %v13
    %s17 = sshll.u32 1, 1
    %s18 = ssub.s32 %s17, 1
    %v20 = vld [vmem:[#allocation0] sm:%s18]
    %s21 = sshll.u32 1, 1
    %s22 = ssub.s32 %s21, 1
    %23 = vst [vmem:[%s1] sm:%s22] %v20

// kernel: tm_score_head_forward.1
$region0: #{tm_score_head_forward.1}
  #allocation0 [shape = 'u32[]', space=smem, size = 0x4, offset = 0x4, fixed_abs, tag = 'smem constant byte address 0x4 - core index']
  #allocation1 [shape = 'u32[144,128]{1,0:T(1,128)}', space=vmem, size = 0x12000, scoped, tag = 'internal scratch']
  %s0 = inlined_call_operand.vmem [shape: f32[64,64], index: 0, kind: input, shape index: {}]
  %s1 = inlined_call_operand.vmem [shape: f32[64,128], index: 1, kind: input, shape index: {}]
  %s2 = inlined_call_operand.vmem [shape: f32[1,128], index: 2, kind: input, shape index: {}]
  %s3 = inlined_call_operand.vmem [shape: f32[64,128], index: 3, kind: output, shape index: {}]
  %s4 = sld [smem:[#allocation0]]
  $region45: #{tm_score_head_forward.1} parent=0
    _
  %s6 = ssub.s32 1, %s4
  %s7 = scalar_select 0, %s6, %s4
  loop: start=0, step=1, limit=4
  $region2: #{tm_score_head_forward.1} parent=0 // loop_pre_header
    _
  $region3: #{tm_score_head_forward.1} parent=0 // loop_header
    %s9 = sphi 0, %s13
    %p10 = scmp.ge.s32.totalorder %s9, 4
    %s19 = sphi 0, %s21
    %s22 = sphi 0, %s19
    %s23 = sphi 0, %s22
    %s39 = sphi 0, %s23
    %s43 = sphi 0, %s43
    %s45 = sphi 0, %s43
    %s46 = sphi 0, %s45
    %s60 = sphi 0, %s46
    %s64 = sphi 0, %s64
    %s66 = sphi 0, %s64
    %s67 = sphi 0, %s66
    %s81 = sphi 0, %s67
    %s87 = sphi 0, %s89
    %s90 = sphi 0, %s87
    %s91 = sphi 0, %s90
    %s107 = sphi 0, %s91
  $region4: #{tm_score_head_forward.1} parent=0 // loop_header_branch
    %12 = sbr.rel (%p10) target = $region8
  $region5: #{tm_score_head_forward.1} parent=0 // loop_body
    %s14 = ssub.s32 %s9, 1
    %s15 = ssub.s32 %s9, 2
    %s16 = sadd.s32 %s9, 1
    %s17 = ssub.s32 %s9, %s16
    %p18 = scmp.eq.s32.totalorder %s17, 0
    %s20 = sadd.s32 %s19, 1
    %s21 = scalar_select %p18, %s19, %s20
    %p24 = pneg %p18
    %p25 = scmp.eq.s32.totalorder %s9, 1
    %p26 = por %p24, %p25
    %p27 = scmp.ne.s32.totalorder %s19, %s22
    %p28 = scmp.eq.s32.totalorder %s9, 0
    %p29 = por %p27, %p28
    %p30 = scmp.ne.s32.totalorder %s19, %s22
    %p31 = scmp.eq.s32.totalorder %s14, 1
    %p32 = por %p30, %p31
    %p33 = scmp.ne.s32.totalorder %s22, %s23
    %p34 = scmp.eq.s32.totalorder %s14, 0
    %p35 = por %p33, %p34
    %p36 = scmp.ne.s32.totalorder %s22, %s23
    %p37 = scmp.eq.s32.totalorder %s15, 1
    %p38 = por %p36, %p37
    %p40 = scmp.ne.s32.totalorder %s23, %s39
    %p41 = scmp.eq.s32.totalorder %s15, 0
    %p42 = por %p40, %p41
    %s44 = sadd.s32 %s43, 1
    %p47 = scmp.eq.s32.totalorder %s9, 1
    %p48 = scmp.ne.s32.totalorder %s43, %s45
    %p49 = scmp.eq.s32.totalorder %s9, 0
    %p50 = por %p48, %p49
    %p51 = scmp.ne.s32.totalorder %s43, %s45
    %p52 = scmp.eq.s32.totalorder %s14, 1
    %p53 = por %p51, %p52
    %p54 = scmp.ne.s32.totalorder %s45, %s46
    %p55 = scmp.eq.s32.totalorder %s14, 0
    %p56 = por %p54, %p55
    %p57 = scmp.ne.s32.totalorder %s45, %s46
    %p58 = scmp.eq.s32.totalorder %s15, 1
    %p59 = por %p57, %p58
    %p61 = scmp.ne.s32.totalorder %s46, %s60
    %p62 = scmp.eq.s32.totalorder %s15, 0
    %p63 = por %p61, %p62
    %s65 = sadd.s32 %s64, 1
    %p68 = scmp.eq.s32.totalorder %s9, 1
    %p69 = scmp.ne.s32.totalorder %s64, %s66
    %p70 = scmp.eq.s32.totalorder %s9, 0
    %p71 = por %p69, %p70
    %p72 = scmp.ne.s32.totalorder %s64, %s66
    %p73 = scmp.eq.s32.totalorder %s14, 1
    %p74 = por %p72, %p73
    %p75 = scmp.ne.s32.totalorder %s66, %s67
    %p76 = scmp.eq.s32.totalorder %s14, 0
    %p77 = por %p75, %p76
    %p78 = scmp.ne.s32.totalorder %s66, %s67
    %p79 = scmp.eq.s32.totalorder %s15, 1
    %p80 = por %p78, %p79
    %p82 = scmp.ne.s32.totalorder %s67, %s81
    %p83 = scmp.eq.s32.totalorder %s15, 0
    %p84 = por %p82, %p83
    %s85 = ssub.s32 %s9, %s16
    %p86 = scmp.eq.s32.totalorder %s85, 0
    %s88 = sadd.s32 %s87, 1
    %s89 = scalar_select %p86, %s87, %s88
    %p92 = pneg %p86
    %p93 = scmp.eq.s32.totalorder %s9, 1
    %p94 = por %p92, %p93
    %p95 = scmp.ne.s32.totalorder %s87, %s90
    %p96 = scmp.eq.s32.totalorder %s9, 0
    %p97 = por %p95, %p96
    %p98 = scmp.ne.s32.totalorder %s87, %s90
    %p99 = scmp.eq.s32.totalorder %s14, 1
    %p100 = por %p98, %p99
    %p101 = scmp.ne.s32.totalorder %s90, %s91
    %p102 = scmp.eq.s32.totalorder %s14, 0
    %p103 = por %p101, %p102
    %p104 = scmp.ne.s32.totalorder %s90, %s91
    %p105 = scmp.eq.s32.totalorder %s15, 1
    %p106 = por %p104, %p105
    %p108 = scmp.ne.s32.totalorder %s91, %s107
    %p109 = scmp.eq.s32.totalorder %s15, 0
    %p110 = por %p108, %p109
    %p111 = scmp.le.s32.totalorder 1, %s9
    %p112 = scmp.lt.s32.totalorder %s9, 3
    %p113 = pnand %p111, %p112
    %p114 = pneg %p113
    // Predicated region
    $region9: #{tm_score_head_forward.1} parent=5 // pred_check
      _
    $region10: #{tm_score_head_forward.1} parent=5 // pred_check_branch
      %116 = sbr.rel (%p113) target = $region12
    $region11: #{tm_score_head_forward.1} parent=5 // pred_region
      %s117 = ssub.s32 %s9, 1
      // Predicated region
      $region13: #{tm_score_head_forward.1} parent=11 // pred_check
        %p118 = pneg %p56
      $region14: #{tm_score_head_forward.1} parent=11 // pred_check_branch
        %120 = sbr.rel (%p118) target = $region16
      $region15: #{tm_score_head_forward.1} parent=11 // pred_region
        _
      $region16: #{tm_score_head_forward.1} parent=11 // pred_fallthru
        _
      // Predicated region
      $region17: #{tm_score_head_forward.1} parent=11 // pred_check
        %p121 = pneg %p77
      $region18: #{tm_score_head_forward.1} parent=11 // pred_check_branch
        %123 = sbr.rel (%p121) target = $region20
      $region19: #{tm_score_head_forward.1} parent=11 // pred_region
        _
      $region20: #{tm_score_head_forward.1} parent=11 // pred_fallthru
        _
    $region12: #{tm_score_head_forward.1} parent=5 // pred_fallthru
      _
    %p124 = scmp.lt.s32.totalorder %s9, 2
    // Predicated region
    $region21: #{tm_score_head_forward.1} parent=5 // pred_check
      %p125 = pneg %p124
    $region22: #{tm_score_head_forward.1} parent=5 // pred_check_branch
      %127 = sbr.rel (%p125) target = $region24
    $region23: #{tm_score_head_forward.1} parent=5 // pred_region
      // Predicated region
      $region25: #{tm_score_head_forward.1} parent=23 // pred_check
        %p128 = pneg %p29
      $region26: #{tm_score_head_forward.1} parent=23 // pred_check_branch
        %130 = sbr.rel (%p128) target = $region28
      $region27: #{tm_score_head_forward.1} parent=23 // pred_region
        %s131 = smul.u32 4, %s9
        %p132 = scmp.lt.s32.totalorder %s131, 7
        %s133 = scalar_select %p132, %s131, 7
        %s134 = smul.addr %s133, 8
        %s135 = scalar_lea.vmem %s0, %s134
        %s136 = smul.u32 4, %s9
      $region28: #{tm_score_head_forward.1} parent=23 // pred_fallthru
        _
    $region24: #{tm_score_head_forward.1} parent=5 // pred_fallthru
      _
    %p137 = scmp.le.s32.totalorder 1, %s9
    %p138 = scmp.lt.s32.totalorder %s9, 3
    %p139 = pnand %p137, %p138
    %p140 = pneg %p139
    // Predicated region
    $region29: #{tm_score_head_forward.1} parent=5 // pred_check
      _
    $region30: #{tm_score_head_forward.1} parent=5 // pred_check_branch
      %142 = sbr.rel (%p139) target = $region32
    $region31: #{tm_score_head_forward.1} parent=5 // pred_region
      %s143 = ssub.s32 %s9, 1
      %s144 = smul.u32 4, %s14
      %p145 = scmp.lt.s32.totalorder %s144, 7
      %s146 = scalar_select %p145, %s144, 7
      %s147 = smul.addr %s146, 8
      %s148 = scalar_lea.vmem %s0, %s147
      %p149 = pneg %p35
      %p150 = pneg %p32
      %p151 = pneg %p56
      %p152 = pneg %p53
      %p153 = pneg %p77
      %p154 = pneg %p74
      %p155 = pneg %p103
      %p156 = pneg %p100
      %s157 = smul.u32 4, %s14
      %p158 = scmp.lt.s32.totalorder %s157, 7
      %s159 = scalar_select %p158, %s157, 7
      %s160 = smul.addr %s159, 8
      %s161 = scalar_lea.vmem %s3, %s160
      %s162 = smul.u32 4, %s14
      %p163 = scmp.lt.s32.totalorder %s162, 7
      %s164 = scalar_select %p163, %s162, 7
      %s165 = smul.addr %s164, 8
      %s166 = scalar_lea.vmem %s0, %s165
      %s167 = smul.u32 4, %s14
      %s168 = smul.u32 4, %s14
      %p169 = scmp.lt.s32.totalorder %s168, 7
      %s170 = scalar_select %p169, %s168, 7
      %s171 = smul.addr %s170, 8
      %s172 = scalar_lea.vmem %s3, %s171
      %s173 = smul.u32 4, %s14
      %v174 = vld [vmem:[%s166] sm:$0xff]
      %v175 = vld [vmem:[%s166 + $0x8] sm:$0xff]
      %v176 = vld [vmem:[%s166 + $0x10] sm:$0xff]
      %v177 = vld [vmem:[%s166 + $0x18] sm:$0xff]
      %v178 = vld [vmem:[%s1] sm:$0xff]
      %v179 = vld [vmem:[%s1 + $0x8] sm:$0xff]
      %v180 = vld [vmem:[%s1 + $0x10] sm:$0xff]
      %v181 = vld [vmem:[%s1 + $0x18] sm:$0xff]
      %v182 = vld [vmem:[%s1 + $0x20] sm:$0xff]
      %v183 = vld [vmem:[%s1 + $0x28] sm:$0xff]
      %v184 = vld [vmem:[%s1 + $0x30] sm:$0xff]
      %v185 = vld [vmem:[%s1 + $0x38] sm:$0xff]
      %v186 = vld [vmem:[%s2] sm:$0x1]
      %v188 = vlaneseq
      %v189 = vshrl.u32 %v188, 7
      %v190 = vsub.s32 0, %v189
      %v191 = vrot.slane %v186, %v190
      %vm193 = vcmask 523264
      %v195 = vsel %vm193, %v174, 0
      %v198 = vsel %vm193, %v175, 0
      %v201 = vsel %vm193, %v176, 0
      %v204 = vsel %vm193, %v177, 0
      %206 = vmatprep.subr.mxu0 0.0
      %207 = vmatpush1.msra.mxu0 0.0
      %208 = vmatprep.subr.mxu0 0.0
      %209 = vmatpush1.msra.mxu0 0.0
      %210 = vmatprep.subr.mxu0 0.0
      %211 = vmatpush1.msra.mxu0 0.0
      %212 = vmatprep.subr.mxu0 0.0
      %213 = vmatpush1.msra.mxu0 0.0
      %214 = vmatprep.subr.mxu0 0.0
      %215 = vmatpush1.msra.mxu0 0.0
      %216 = vmatprep.subr.mxu0 0.0
      %217 = vmatpush1.msra.mxu0 0.0
      %218 = vmatprep.subr.mxu0 0.0
      %219 = vmatpush1.msra.mxu0 0.0
      %220 = vmatprep.subr.mxu0 0.0
      %221 = vmatpush1.msra.mxu0 0.0
      %222 = vmatprep.subr.mxu0 0.0
      %223 = vmatpush1.msra.mxu0 %v185
      %224 = vmatprep.subr.mxu0 0.0
      %225 = vmatpush1.msra.mxu0 %v184
      %226 = vmatprep.subr.mxu0 0.0
      %227 = vmatpush1.msra.mxu0 %v183
      %228 = vmatprep.subr.mxu0 0.0
      %229 = vmatpush1.msra.mxu0 %v182
      %230 = vmatprep.subr.mxu0 0.0
      %231 = vmatpush1.msra.mxu0 %v181
      %232 = vmatprep.subr.mxu0 0.0
      %233 = vmatpush1.msra.mxu0 %v180
      %234 = vmatprep.subr.mxu0 0.0
      %235 = vmatpush1.msra.mxu0 %v179
      %236 = vmatprep.subr.mxu0 0.0
      %237 = vmatpush1.msra.mxu0 %v178
      %238 = vmatprep.subr.mxu0 0.0
      %239 = vmatpush2.msra.mxu0 0.0
      %240 = vmatprep.subr.mxu0 0.0
      %241 = vmatpush2.msra.mxu0 0.0
      %242 = vmatprep.subr.mxu0 0.0
      %243 = vmatpush2.msra.mxu0 0.0
      %244 = vmatprep.subr.mxu0 0.0
      %245 = vmatpush2.msra.mxu0 0.0
      %246 = vmatprep.subr.mxu0 0.0
      %247 = vmatpush2.msra.mxu0 0.0
      %248 = vmatprep.subr.mxu0 0.0
      %249 = vmatpush2.msra.mxu0 0.0
      %250 = vmatprep.subr.mxu0 0.0
      %251 = vmatpush2.msra.mxu0 0.0
      %252 = vmatprep.subr.mxu0 0.0
      %253 = vmatpush2.msra.mxu0 0.0
      %254 = vmatprep.subr.mxu0 0.0
      %255 = vmatpush2.msra.mxu0 0.0
      %256 = vmatprep.subr.mxu0 0.0
      %257 = vmatpush2.msra.mxu0 0.0
      %258 = vmatprep.subr.mxu0 0.0
      %259 = vmatpush2.msra.mxu0 0.0
      %260 = vmatprep.subr.mxu0 0.0
      %261 = vmatpush2.msra.mxu0 0.0
      %262 = vmatprep.subr.mxu0 0.0
      %263 = vmatpush2.msra.mxu0 0.0
      %264 = vmatprep.subr.mxu0 0.0
      %265 = vmatpush2.msra.mxu0 0.0
      %266 = vmatprep.subr.mxu0 0.0
      %267 = vmatpush2.msra.mxu0 0.0
      %268 = vmatprep.subr.mxu0 0.0
      %269 = vmatpush2.msra.mxu0 0.0
      %270 = vmatprep.mubr.f32.mxu0 0.0
      %271 = vmatmul.mubr.f32.gmra.mxu0 %v195
      %v272 = vpop.f32.mrf.mxu0
      %v273 = vadd.f32 %v191, %v272
      %v274 = vpop.f32.mrf.mxu0
      %275 = vmatprep.mubr.f32.mxu0 0.0
      %276 = vmatmul.mubr.f32.gmra.mxu0 %v198
      %v277 = vpop.f32.mrf.mxu0
      %v278 = vadd.f32 %v191, %v277
      %v279 = vpop.f32.mrf.mxu0
      %280 = vmatprep.mubr.f32.mxu0 0.0
      %281 = vmatmul.mubr.f32.gmra.mxu0 %v201
      %v282 = vpop.f32.mrf.mxu0
      %v283 = vadd.f32 %v191, %v282
      %v284 = vpop.f32.mrf.mxu0
      %285 = vmatprep.mubr.f32.mxu0 0.0
      %286 = vmatmul.mubr.f32.gmra.mxu0 %v204
      %v287 = vpop.f32.mrf.mxu0
      %v288 = vadd.f32 %v191, %v287
      %v289 = vpop.f32.mrf.mxu0
      %290 = vdwg.mxu0
      %291 = vst [vmem:[%s172] sm:$0xff] %v273
      %292 = vst [vmem:[%s172 + $0x8] sm:$0xff] %v278
      %293 = vst [vmem:[%s172 + $0x10] sm:$0xff] %v283
      %294 = vst [vmem:[%s172 + $0x18] sm:$0xff] %v288
      %s295 = smul.u32 4, %s14
      %p296 = scmp.lt.s32.totalorder %s295, 7
      %s297 = scalar_select %p296, %s295, 7
      %s298 = smul.addr %s297, 8
      %s299 = scalar_lea.vmem %s3, %s298
      // Predicated region
      $region33: #{tm_score_head_forward.1} parent=31 // pred_check
        %p300 = pneg %p100
      $region34: #{tm_score_head_forward.1} parent=31 // pred_check_branch
        %302 = sbr.rel (%p300) target = $region36
      $region35: #{tm_score_head_forward.1} parent=31 // pred_region
        %s303 = smul.u32 4, %s14
      $region36: #{tm_score_head_forward.1} parent=31 // pred_fallthru
        _
    $region32: #{tm_score_head_forward.1} parent=5 // pred_fallthru
      _
    %p304 = scmp.le.s32.totalorder 2, %s9
    // Predicated region
    $region37: #{tm_score_head_forward.1} parent=5 // pred_check
      %p305 = pneg %p304
    $region38: #{tm_score_head_forward.1} parent=5 // pred_check_branch
      %307 = sbr.rel (%p305) target = $region40
    $region39: #{tm_score_head_forward.1} parent=5 // pred_region
      %s308 = ssub.s32 %s9, 2
      // Predicated region
      $region41: #{tm_score_head_forward.1} parent=39 // pred_check
        %p309 = pneg %p106
      $region42: #{tm_score_head_forward.1} parent=39 // pred_check_branch
        %311 = sbr.rel (%p309) target = $region44
      $region43: #{tm_score_head_forward.1} parent=39 // pred_region
        %s312 = smul.u32 4, %s15
        %p313 = scmp.lt.s32.totalorder %s312, 7
        %s314 = scalar_select %p313, %s312, 7
        %s315 = smul.addr %s314, 8
        %s316 = scalar_lea.vmem %s3, %s315
      $region44: #{tm_score_head_forward.1} parent=39 // pred_fallthru
        _
    $region40: #{tm_score_head_forward.1} parent=5 // pred_fallthru
      _
  $region6: #{tm_score_head_forward.1} parent=0 // loop_footer
    %s13 = sadd.s32 1, %s9
  $region7: #{tm_score_head_forward.1} parent=0 // loop_footer_branch
    %8 = sbr.rel target = $region3
  $region8: #{tm_score_head_forward.1} parent=0 // loop_exit
    _

</llo_original>
